<compile_context>
chip_gen: v7x
topology: tpu7x:2x2x1
jax: 0.10.0
libtpu: 0.0.40
codegen_flags: <defaults>
</compile_context>

<pallas_src>
import jax
import jax.numpy as jnp
from jax.experimental import pallas as pl
from jax.experimental.pallas import tpu as pltpu


# ---------------------------------------------------------------------------
# Kernel
# ---------------------------------------------------------------------------
def _make_grad_kernel(h, w):
    hw = h * w

    def kernel(x_ref, dx_ref, dy_ref):
        x = x_ref[...]                                   # (BK, H*W), lane-dense

        # Boundary masks depend only on the lane position inside a plane, so
        # compute them once on a (1, hw) iota and broadcast into the where()
        # instead of per-element int div/mod on the full (BK, hw) tile.
        lane = jax.lax.broadcasted_iota(jnp.int32, (1, hw), 1)
        col = lane % w                                   # only mod kept (cheap)
        left_edge = col == 0
        right_edge = col == w - 1
        top_row = lane < w                               # row == 0 without //
        bot_row = lane >= hw - w                         # row == h-1 without //

        # ---- d/dx : conv [-0.5, 0, 0.5] + ReplicationPad2d((1,1,0,0)) ----
        # roll(x, hw-1) == roll(x, -1): element i holds x[i+1] (wrapped);
        # roll(x, 1): element i holds x[i-1] (wrapped).
        x_next = pltpu.roll(x, shift=(hw - 1) % hw, axis=1)
        x_prev = pltpu.roll(x, shift=1 % hw, axis=1)
        x_next = jnp.where(right_edge, x, x_next)        # replicate right edge
        x_prev = jnp.where(left_edge, x, x_prev)         # replicate left edge
        dx_ref[...] = (0.5 * (x_next - x_prev)).astype(dx_ref.dtype)

        # ---- d/dy : conv [[-0.5],[0],[0.5]] + ReplicationPad2d((0,0,1,1)) --
        x_down = pltpu.roll(x, shift=(hw - w) % hw, axis=1)   # x[i+w] (wrapped)
        x_up = pltpu.roll(x, shift=w % hw, axis=1)            # x[i-w] (wrapped)
        x_down = jnp.where(bot_row, x, x_down)                # replicate bottom
        x_up = jnp.where(top_row, x, x_up)                    # replicate top
        dy_ref[...] = (0.5 * (x_down - x_up)).astype(dy_ref.dtype)

    return kernel


# ---------------------------------------------------------------------------
# Wrapper
# ---------------------------------------------------------------------------
def _chip_kind():
    try:
        return jax.devices()[0].device_kind.lower()
    except Exception:
        return ""


def _gradient_batch_xla(img):
    """Pure-XLA fallback / reference (identical semantics to the PyTorch op)."""
    padx = jnp.pad(img, ((0, 0), (0, 0), (0, 0), (1, 1)), mode="edge")
    pady = jnp.pad(img, ((0, 0), (0, 0), (1, 1), (0, 0)), mode="edge")
    dx = 0.5 * (padx[..., :, 2:] - padx[..., :, :-2])
    dy = 0.5 * (pady[..., 2:, :] - pady[..., :-2, :])
    return dx, dy


def _pick_block_rows(nc, plane_bytes, target_tile_bytes, max_tile_bytes, is_v7x):
    """Choose BK (planes per grid step).

    BK must be a multiple of 8 (f32 sublanes) or equal the full extent nc.
    Returns None if no legal tiling fits the pipelined-VMEM budget.
    """
    one_mib = 1 << 20
    target_tile_bytes = min(target_tile_bytes, max_tile_bytes)

    if nc * plane_bytes <= target_tile_bytes:
        bk = nc                                     # whole problem, one step
    elif nc <= 8:
        # Cannot split below the full extent without violating the sublane rule.
        bk = nc if nc * plane_bytes <= max_tile_bytes else None
    else:
        bk = (target_tile_bytes // plane_bytes) // 8 * 8
        if bk == 0:
            bk = 8 if 8 * plane_bytes <= max_tile_bytes else None
        else:
            bk = min(bk, nc)
            if bk < nc:
                # Prefer a BK that divides nc (no ragged tail block) as long
                # as it costs at most ~2x tile shrinkage.
                for cand in range(bk, max(8, bk // 2) - 1, -8):
                    if nc % cand == 0:
                        bk = cand
                        break
    if bk is None:
        return None

    # v7x only: 2 TensorCores share 3.2 TB/s HBM -- ensure a "parallel" grid
    # of >= 2 when each half still moves a >= ~1 MiB tile.
    if is_v7x and bk == nc and nc > 8:
        half = ((nc + 1) // 2 + 7) // 8 * 8
        if half < nc and half * plane_bytes >= one_mib:
            bk = half

    return bk


def gradient_batch(img):
    """img: (N, C, H, W) float32 -> (img_dx, img_dy), each (N, C, H, W)."""
    n, c, h, w = img.shape
    nc = n * c
    hw = h * w
    itemsize = img.dtype.itemsize
    plane_bytes = hw * itemsize

    kind = _chip_kind()
    is_v7x = "v7" in kind
    is_v5e = ("v5 lite" in kind) or ("v5e" in kind) or ("v5litepod" in kind)

    # Per-generation VMEM budget / tile target.
    # Pipelined footprint ~= 2 buffers x (1 input + 2 outputs) x tile_bytes.
    if is_v7x:
        vmem_limit = 32 << 20      # 64 MiB physical VMEM per TC -> stay well under
        target_tile = 4 << 20
    elif is_v5e:
        vmem_limit = 32 << 20      # ~820 GB/s HBM: 1-2 MiB tiles already saturate
        target_tile = 2 << 20
    else:                          # v6e / unknown: 128 MiB physical VMEM
        vmem_limit = 64 << 20
        target_tile = 8 << 20
    max_tile = max(1, (vmem_limit - (2 << 20)) // 6)   # headroom for compiler scratch

    bk = _pick_block_rows(nc, plane_bytes, target_tile, max_tile, is_v7x)
    if bk is None:
        # TODO(synk): tile the H*W axis with explicit row halos for planes too
        # large for per-plane tiling; fall back to XLA for now.
        return _gradient_batch_xla(img)

    # Lane-dense flattened layout (N*C, H*W): output lane dim is hw (>=128 for
    # realistic feature maps) so stores are unmasked full-lane vst.
    x2d = img.reshape(nc, hw)

    grid = (pl.cdiv(nc, bk),)
    block = pl.BlockSpec((bk, hw), lambda i: (i, 0))
    out_shape = jax.ShapeDtypeStruct((nc, hw), img.dtype)

    cost = pl.CostEstimate(
        flops=6 * nc * hw,                       # ~ (sub + mul) x2 per element
        transcendentals=0,
        bytes_accessed=3 * nc * hw * itemsize,   # 1 read + 2 writes
    )

    dx, dy = pl.pallas_call(
        _make_grad_kernel(h, w),
        out_shape=(out_shape, out_shape),
        grid_spec=pltpu.PrefetchScalarGridSpec(
            num_scalar_prefetch=0,
            grid=grid,
            in_specs=[block],
            out_specs=(block, block),
        ),
        compiler_params=pltpu.CompilerParams(
            dimension_semantics=("parallel",),
            vmem_limit_bytes=vmem_limit,
        ),
        cost_estimate=cost,
    )(x2d)

    return dx.reshape(n, c, h, w), dy.reshape(n, c, h, w)


# TODO(synk): the DeepLK iterative solver (grid_sample bilinear warp in
# warp_hmg, the batched 8x8 InverseBatch, and the data-dependent while-loop)
# is left at the JAX/XLA level; only the GradientBatch forward is a Pallas
# kernel here.

if __name__ == "__main__":
    key = jax.random.PRNGKey(0)
    k1, k2 = jax.random.split(key)

    # Case 1: typical small DeepLK feature map (nc = 8, hw = 256).
    N, C, H, W = 2, 4, 16, 16
    img = jax.random.normal(k1, (N, C, H, W), dtype=jnp.float32)
    dx, dy = gradient_batch(img)
    jax.block_until_ready((dx, dy))
    ref_dx, ref_dy = _gradient_batch_xla(img)
    assert dx.shape == (N, C, H, W) and dy.shape == (N, C, H, W)
    assert jnp.allclose(dx, ref_dx, atol=1e-6), "dx mismatch (case 1)"
    assert jnp.allclose(dy, ref_dy, atol=1e-6), "dy mismatch (case 1)"

    # Case 2: non-power-of-two width and nc not a multiple of 8 (full-extent BK).
    N2, C2, H2, W2 = 1, 3, 16, 24
    img2 = jax.random.normal(k2, (N2, C2, H2, W2), dtype=jnp.float32)
    dx2, dy2 = gradient_batch(img2)
    jax.block_until_ready((dx2, dy2))
    ref_dx2, ref_dy2 = _gradient_batch_xla(img2)
    assert jnp.allclose(dx2, ref_dx2, atol=1e-6), "dx mismatch (case 2)"
    assert jnp.allclose(dy2, ref_dy2, atol=1e-6), "dy mismatch (case 2)"

    print("KERNEL_OK")
</pallas_src>

<mosaic_0001>
module attributes {stable_mosaic.version = 11 : i64} {
  func.func @kernel(%arg0: i32, %arg1: memref<8x256xf32, #tpu.memory_space<vmem>>, %arg2: memref<8x256xf32, #tpu.memory_space<vmem>>, %arg3: memref<8x256xf32, #tpu.memory_space<vmem>>) attributes {dimension_semantics = [#tpu.dimension_semantics<parallel>], iteration_bounds = array<i64: 1>, scalar_prefetch = 0 : i64, scratch_operands = 0 : i64, tpu.core_type = #tpu.core_type<tc>, window_params = [{transform_indices = @transform_0, window_bounds = array<i64: 8, 256>}, {transform_indices = @transform_1, window_bounds = array<i64: 8, 256>}, {transform_indices = @transform_2, window_bounds = array<i64: 8, 256>}]} {
    %c0 = arith.constant 0 : index
    %c0_0 = arith.constant 0 : index
    %0 = vector.load %arg1[%c0, %c0_0] : memref<8x256xf32, #tpu.memory_space<vmem>>, vector<8x256xf32>
    %1 = tpu.iota {dimensions = array<i32: 1>} : vector<1x256xi32>
    %c16_i32 = arith.constant 16 : i32
    %c0_i32 = arith.constant 0 : i32
    %2 = arith.cmpi eq, %c16_i32, %c0_i32 : i32
    %c1_i32 = arith.constant 1 : i32
    %3 = arith.select %2, %c1_i32, %c16_i32 : i32
    %4 = vector.broadcast %3 : i32 to vector<1x256xi32>
    %5 = arith.remsi %1, %4 : vector<1x256xi32>
    %c0_i32_1 = arith.constant 0 : i32
    %6 = vector.broadcast %c0_i32_1 : i32 to vector<1x256xi32>
    %7 = arith.cmpi ne, %5, %6 : vector<1x256xi32>
    %c0_i32_2 = arith.constant 0 : i32
    %8 = vector.broadcast %c0_i32_2 : i32 to vector<1x256xi32>
    %9 = arith.cmpi slt, %5, %8 : vector<1x256xi32>
    %c0_i32_3 = arith.constant 0 : i32
    %10 = arith.cmpi slt, %3, %c0_i32_3 : i32
    %11 = vector.broadcast %10 : i1 to vector<1x256xi1>
    %12 = vector.broadcast %11 : vector<1x256xi1> to vector<1x256xi1>
    %13 = arith.xori %9, %12 : vector<1x256xi1>
    %14 = arith.andi %13, %7 : vector<1x256xi1>
    %15 = vector.broadcast %3 : i32 to vector<1x256xi32>
    %16 = arith.addi %5, %15 : vector<1x256xi32>
    %17 = arith.select %14, %16, %5 : vector<1x256xi1>, vector<1x256xi32>
    %c0_i32_4 = arith.constant 0 : i32
    %18 = vector.broadcast %c0_i32_4 : i32 to vector<1x256xi32>
    %19 = arith.cmpi eq, %17, %18 : vector<1x256xi32>
    %c15_i32 = arith.constant 15 : i32
    %20 = vector.broadcast %c15_i32 : i32 to vector<1x256xi32>
    %21 = arith.cmpi eq, %17, %20 : vector<1x256xi32>
    %c16_i32_5 = arith.constant 16 : i32
    %22 = vector.broadcast %c16_i32_5 : i32 to vector<1x256xi32>
    %23 = arith.cmpi slt, %1, %22 : vector<1x256xi32>
    %c240_i32 = arith.constant 240 : i32
    %24 = vector.broadcast %c240_i32 : i32 to vector<1x256xi32>
    %25 = arith.cmpi sge, %1, %24 : vector<1x256xi32>
    %c255_i32 = arith.constant 255 : i32
    %26 = tpu.dynamic_rotate %0 by %c255_i32 dim 1 : vector<8x256xf32>, i32 -> vector<8x256xf32>
    %c1_i32_6 = arith.constant 1 : i32
    %27 = tpu.dynamic_rotate %0 by %c1_i32_6 dim 1 : vector<8x256xf32>, i32 -> vector<8x256xf32>
    %28 = vector.shape_cast %21 : vector<1x256xi1> to vector<1x256xi1>
    %29 = vector.broadcast %28 : vector<1x256xi1> to vector<8x256xi1>
    %30 = arith.select %29, %0, %26 : vector<8x256xi1>, vector<8x256xf32>
    %31 = vector.shape_cast %19 : vector<1x256xi1> to vector<1x256xi1>
    %32 = vector.broadcast %31 : vector<1x256xi1> to vector<8x256xi1>
    %33 = arith.select %32, %0, %27 : vector<8x256xi1>, vector<8x256xf32>
    %34 = arith.subf %30, %33 : vector<8x256xf32>
    %cst = arith.constant 5.000000e-01 : f32
    %35 = vector.broadcast %cst : f32 to vector<8x256xf32>
    %36 = arith.mulf %35, %34 : vector<8x256xf32>
    %c0_7 = arith.constant 0 : index
    %c0_8 = arith.constant 0 : index
    %37 = vector.load %arg2[%c0_7, %c0_8] : memref<8x256xf32, #tpu.memory_space<vmem>>, vector<8x256xf32>
    tpu.vector_store %arg2[%c0_7, %c0_8], %36 {strides = array<i32>} : memref<8x256xf32, #tpu.memory_space<vmem>>, vector<8x256xf32>,
    %c240_i32_9 = arith.constant 240 : i32
    %38 = tpu.dynamic_rotate %0 by %c240_i32_9 dim 1 : vector<8x256xf32>, i32 -> vector<8x256xf32>
    %c16_i32_10 = arith.constant 16 : i32
    %39 = tpu.dynamic_rotate %0 by %c16_i32_10 dim 1 : vector<8x256xf32>, i32 -> vector<8x256xf32>
    %40 = vector.shape_cast %25 : vector<1x256xi1> to vector<1x256xi1>
    %41 = vector.broadcast %40 : vector<1x256xi1> to vector<8x256xi1>
    %42 = arith.select %41, %0, %38 : vector<8x256xi1>, vector<8x256xf32>
    %43 = vector.shape_cast %23 : vector<1x256xi1> to vector<1x256xi1>
    %44 = vector.broadcast %43 : vector<1x256xi1> to vector<8x256xi1>
    %45 = arith.select %44, %0, %39 : vector<8x256xi1>, vector<8x256xf32>
    %46 = arith.subf %42, %45 : vector<8x256xf32>
    %cst_11 = arith.constant 5.000000e-01 : f32
    %47 = vector.broadcast %cst_11 : f32 to vector<8x256xf32>
    %48 = arith.mulf %47, %46 : vector<8x256xf32>
    %c0_12 = arith.constant 0 : index
    %c0_13 = arith.constant 0 : index
    %49 = vector.load %arg3[%c0_12, %c0_13] : memref<8x256xf32, #tpu.memory_space<vmem>>, vector<8x256xf32>
    tpu.vector_store %arg3[%c0_12, %c0_13], %48 {strides = array<i32>} : memref<8x256xf32, #tpu.memory_space<vmem>>, vector<8x256xf32>,
    return
  }
  func.func @transform_0(%arg0: i32) -> (i32, i32) {
    %c0_i32 = arith.constant 0 : i32
    %c0_i32_0 = arith.constant 0 : i32
    return %arg0, %c0_i32 : i32, i32
  }
  func.func @transform_1(%arg0: i32) -> (i32, i32) {
    %c0_i32 = arith.constant 0 : i32
    %c0_i32_0 = arith.constant 0 : i32
    return %arg0, %c0_i32 : i32, i32
  }
  func.func @transform_2(%arg0: i32) -> (i32, i32) {
    %c0_i32 = arith.constant 0 : i32
    %c0_i32_0 = arith.constant 0 : i32
    return %arg0, %c0_i32 : i32, i32
  }
}

</mosaic_0001>

<llo_original>
// kernel: tpu_custom_call.1
$region0: #{tpu_custom_call.1}
  #allocation0 [shape = 'u32[]', space=smem, size = 0x4, offset = 0x4, fixed_abs, tag = 'smem constant byte address 0x4 - core index']
  #allocation1 [shape = 'u32[144,128]{1,0:T(1,128)}', space=vmem, size = 0x12000, scoped, tag = 'internal scratch']
  %s0 = inlined_call_operand.hbm [shape: f32[8,256], index: 0, kind: input, shape index: {}]
  %s1 = inlined_call_operand.hbm [shape: f32[8,256], index: 1, kind: output, shape index: {0}]
  %s2 = inlined_call_operand.hbm [shape: f32[8,256], index: 2, kind: output, shape index: {1}]
  %3 = xla_tuple %s1, %s2
  %s4 = sld [smem:[#allocation0]]
  $region26: #{tpu_custom_call.1} parent=0
    _
  %s6 = ssub.s32 1, %s4
  %s7 = scalar_select 0, %s6, %s4
  $region1: #{tpu_custom_call.1} parent=0
    #allocation2 [shape = 'u8[8192]{0}', space=vmem, size = 0x2000, scoped, tag = 'input window, operand 0, single buffered']
    #allocation3 [shape = 's32[1]{0}', space=sflag, size = 0x4, scoped, tag = 'scoped memory for tpu_custom_call.1']
    #allocation4 [shape = 's32[1]{0}', space=sflag, size = 0x4, scoped, tag = 'scoped memory for tpu_custom_call.1']
    #allocation5 [shape = 'u8[8192]{0}', space=vmem, size = 0x2000, scoped, tag = 'output window, operand 0, single buffered']
    #allocation6 [shape = 'u8[8192]{0}', space=vmem, size = 0x2000, scoped, tag = 'output window, operand 1, single buffered']
    #allocation7 [shape = 's32[1]{0}', space=sflag, size = 0x4, scoped, tag = 'scoped memory for tpu_custom_call.1']
    %8 = vsyncpa [#allocation3], 0
    %9 = vsyncpa [#allocation4], 0
    %10 = vsyncpa [#allocation7], 0
    // Predicated region
    $region2: #{tpu_custom_call.1} parent=1 // pred_check
      _
    $region3: #{tpu_custom_call.1} parent=1 // pred_check_branch
      %12 = sbr.rel (0) target = $region5
    $region4: #{tpu_custom_call.1} parent=1 // pred_region
      %s14 = ssub.s32 256, 256
      %15 = vsyncadd [#allocation3], %s14
      %s17 = sshll.u32 [#allocation2], 4
      %s18 = int_to_ptr.vmem [resolvable:$true] %s17
      %20 = dma.hbm_to_vmem [thread:$0]  %s0, 256, %s18, [#allocation3]
    $region5: #{tpu_custom_call.1} parent=1 // pred_fallthru
      _
    // Predicated region
    $region6: #{tpu_custom_call.1} parent=1 // pred_check
      _
    $region7: #{tpu_custom_call.1} parent=1 // pred_check_branch
      %22 = sbr.rel (0) target = $region9
    $region8: #{tpu_custom_call.1} parent=1 // pred_region
      %23 = dma.done [#allocation3], 256
    $region9: #{tpu_custom_call.1} parent=1 // pred_fallthru
      _
    %v24 = vld [vmem:[#allocation2] sm:$0xff]
    %v25 = vld [vmem:[#allocation2 + $0x8] sm:$0xff]
    %v26 = vlaneseq
    %v27 = vand.u32 %v26, 127
    %v28 = vadd.s32 %v27, 128
    %vm29 = vcmp.lt.s32.totalorder %v27, 0
    %v30 = vsub.s32 0, %v27
    %v31 = vsel %vm29, %v30, %v27
    %v32 = vshrl.u32 %v31, 4
    %v33 = vand.u32 %v31, 15
    %v34 = vsub.s32 0, %v33
    %v35 = vsel %vm29, %v34, %v33
    %vm36 = vcmp.lt.s32.totalorder %v28, 0
    %v37 = vsub.s32 0, %v28
    %v38 = vsel %vm36, %v37, %v28
    %v39 = vshrl.u32 %v38, 4
    %v40 = vand.u32 %v38, 15
    %v41 = vsub.s32 0, %v40
    %v42 = vsel %vm36, %v41, %v40
    %vm43 = vcmp.ne.s32.totalorder %v35, 0
    %vm44 = vcmp.ne.s32.totalorder %v42, 0
    %vm45 = vcmp.lt.s32.totalorder %v35, 0
    %vm46 = vcmp.lt.s32.totalorder %v42, 0
    %vm47 = vmand %vm45, %vm43
    %vm48 = vmand %vm46, %vm44
    %v49 = vadd.s32 %v35, 16
    %v50 = vadd.s32 %v42, 16
    %v51 = vsel %vm47, %v49, %v35
    %v52 = vsel %vm48, %v50, %v42
    %vm53 = vcmp.eq.s32.totalorder %v51, 0
    %vm54 = vcmp.eq.s32.totalorder %v52, 0
    %vm55 = vcmp.eq.s32.totalorder %v51, 15
    %vm56 = vcmp.eq.s32.totalorder %v52, 15
    %vm57 = vcmp.lt.s32.totalorder %v27, 16
    %vm58 = vcmp.lt.s32.totalorder %v28, 16
    %vm59 = vcmp.ge.s32.totalorder %v27, 240
    %vm60 = vcmp.ge.s32.totalorder %v28, 240
    %61 = vrot.lane.b32.xlu0 %v24, 127
    %v62 = vpop.permute.xlu0 %61
    %63 = vrot.lane.b32.xlu0 %v25, 127
    %v64 = vpop.permute.xlu0 %63
    %vm65 = vcmp.lt.s32.totalorder %v27, 127
    %v66 = vsel %vm65, %v62, %v64
    %v67 = vsel %vm65, %v64, %v62
    %68 = vrot.lane.b32.xlu0 %v24, 1
    %v69 = vpop.permute.xlu0 %68
    %70 = vrot.lane.b32.xlu0 %v25, 1
    %v71 = vpop.permute.xlu0 %70
    %vm72 = vcmp.lt.s32.totalorder %v27, 1
    %v73 = vsel %vm72, %v69, %v71
    %v74 = vsel %vm72, %v71, %v69
    %v75 = vsel %vm55, 1, 0
    %v76 = vsel %vm56, 1, 0
    %vm77 = vcmp.eq.s32.totalorder %v75, 1
    %vm78 = vcmp.eq.s32.totalorder %v76, 1
    %v79 = vsel %vm77, %v24, %v66
    %v80 = vsel %vm78, %v25, %v67
    %v81 = vsel %vm53, 1, 0
    %v82 = vsel %vm54, 1, 0
    %vm83 = vcmp.eq.s32.totalorder %v81, 1
    %vm84 = vcmp.eq.s32.totalorder %v82, 1
    %v85 = vsel %vm83, %v24, %v74
    %v86 = vsel %vm84, %v25, %v73
    %v87 = vsub.f32 %v79, %v85
    %v88 = vsub.f32 %v80, %v86
    %v89 = vmul.f32 %v87, 0.5
    %v90 = vmul.f32 %v88, 0.5
    %91 = vst [vmem:[#allocation5] sm:$0xff] %v89
    %92 = vst [vmem:[#allocation5 + $0x8] sm:$0xff] %v90
    %93 = vrot.lane.b32.xlu0 %v24, 112
    %v94 = vpop.permute.xlu0 %93
    %95 = vrot.lane.b32.xlu0 %v25, 112
    %v96 = vpop.permute.xlu0 %95
    %vm97 = vcmp.lt.s32.totalorder %v27, 112
    %v98 = vsel %vm97, %v94, %v96
    %v99 = vsel %vm97, %v96, %v94
    %100 = vrot.lane.b32.xlu0 %v24, 16
    %v101 = vpop.permute.xlu0 %100
    %102 = vrot.lane.b32.xlu0 %v25, 16
    %v103 = vpop.permute.xlu0 %102
    %v104 = vsel %vm57, %v101, %v103
    %v105 = vsel %vm57, %v103, %v101
    %v106 = vsel %vm59, 1, 0
    %v107 = vsel %vm60, 1, 0
    %vm108 = vcmp.eq.s32.totalorder %v106, 1
    %vm109 = vcmp.eq.s32.totalorder %v107, 1
    %v110 = vsel %vm108, %v24, %v98
    %v111 = vsel %vm109, %v25, %v99
    %v112 = vsel %vm57, 1, 0
    %v113 = vsel %vm58, 1, 0
    %vm114 = vcmp.eq.s32.totalorder %v112, 1
    %vm115 = vcmp.eq.s32.totalorder %v113, 1
    %v116 = vsel %vm114, %v24, %v105
    %v117 = vsel %vm115, %v25, %v104
    %v118 = vsub.f32 %v110, %v116
    %v119 = vsub.f32 %v111, %v117
    %v120 = vmul.f32 %v118, 0.5
    %v121 = vmul.f32 %v119, 0.5
    %122 = vst [vmem:[#allocation6] sm:$0xff] %v120
    %123 = vst [vmem:[#allocation6 + $0x8] sm:$0xff] %v121
    // Predicated region
    $region10: #{tpu_custom_call.1} parent=1 // pred_check
      _
    $region11: #{tpu_custom_call.1} parent=1 // pred_check_branch
      %125 = sbr.rel (0) target = $region13
    $region12: #{tpu_custom_call.1} parent=1 // pred_region
      %s127 = ssub.s32 256, 256
      %128 = vsyncadd [#allocation4], %s127
      %s130 = sshll.u32 [#allocation5], 4
      %s131 = int_to_ptr.vmem [resolvable:$true] %s130
      %133 = dma.vmem_to_hbm [thread:$0]  %s131, 256, %s1, [#allocation4]
    $region13: #{tpu_custom_call.1} parent=1 // pred_fallthru
      _
    // Predicated region
    $region14: #{tpu_custom_call.1} parent=1 // pred_check
      _
    $region15: #{tpu_custom_call.1} parent=1 // pred_check_branch
      %135 = sbr.rel (0) target = $region17
    $region16: #{tpu_custom_call.1} parent=1 // pred_region
      %s137 = ssub.s32 256, 256
      %138 = vsyncadd [#allocation7], %s137
      %s140 = sshll.u32 [#allocation6], 4
      %s141 = int_to_ptr.vmem [resolvable:$true] %s140
      %143 = dma.vmem_to_hbm [thread:$0]  %s141, 256, %s2, [#allocation7]
    $region17: #{tpu_custom_call.1} parent=1 // pred_fallthru
      _
    // Predicated region
    $region18: #{tpu_custom_call.1} parent=1 // pred_check
      _
    $region19: #{tpu_custom_call.1} parent=1 // pred_check_branch
      %145 = sbr.rel (0) target = $region21
    $region20: #{tpu_custom_call.1} parent=1 // pred_region
      %146 = dma.done [#allocation4], 256
    $region21: #{tpu_custom_call.1} parent=1 // pred_fallthru
      _
    // Predicated region
    $region22: #{tpu_custom_call.1} parent=1 // pred_check
      _
    $region23: #{tpu_custom_call.1} parent=1 // pred_check_branch
      %148 = sbr.rel (0) target = $region25
    $region24: #{tpu_custom_call.1} parent=1 // pred_region
      %149 = dma.done [#allocation7], 256
    $region25: #{tpu_custom_call.1} parent=1 // pred_fallthru
      _
    %150 = vsyncpa [#allocation3], 1
    %151 = vsyncpa [#allocation4], 1
    %152 = vsyncpa [#allocation7], 1

</llo_original>
